<compile_context>
chip_gen: v7x
topology: tpu7x:2x2x1
jax: 0.10.0
libtpu: 0.0.40
codegen_flags: <defaults>
</compile_context>

<pallas_src>
import numpy as np
import jax
import jax.numpy as jnp
from jax import lax
from jax.experimental import pallas as pl
from jax.experimental.pallas import tpu as pltpu


LANE_TILE = 4096   # frame-axis tile; multiple of 256 (v6e/v7x MXU) and 128 (v5e)


def _make_kernel(n_fft, hop, Fp, chunks, L, Lf, n_frames):
    def kernel(sig_ref, bfw_ref, biw_ref, out_ref, frames_ref):
        # sig block: (1, 1, hop, Ws), Ws = L + 2*(chunks-1) (halo both sides).
        sig = sig_ref[0, 0]                                       # (hop, Ws)

        # ---- rebuild the n_fft frame rows: frames[j*hop+h, c] = sig[h, c+j] ----
        for j in range(chunks):                                    # static unrolled
            frames_ref[j * hop:(j + 1) * hop, :] = sig[:, j:j + Lf]
        frames = frames_ref[...]                                   # (n_fft, Lf)

        # ---- STFT: ONE fused MXU matmul (hann analysis window folded into bfw) ----
        spec = jnp.dot(bfw_ref[...], frames,
                       preferred_element_type=jnp.float32)         # (2*Fp, Lf)
        real = spec[:Fp, :]
        imag = spec[Fp:, :]

        # ---- mag/phase roundtrip mag*exp(i*angle): scale is exactly 1 where
        #      mag>0 and 0 where mag==0 -> one compare, no sqrt / divide ----
        nz = (real * real + imag * imag > 0.0).astype(jnp.float32)  # (Fp, Lf)
        spec2 = spec * jnp.concatenate([nz, nz], axis=0)            # (2*Fp, Lf)

        # ---- inverse one-sided DFT: ONE fused MXU matmul (synthesis window and
        #      interior istft window^2 envelope reciprocal folded into biw) ----
        yw = jnp.dot(biw_ref[...], spec2,
                     preferred_element_type=jnp.float32)            # (n_fft, Lf)

        # ---- zero frames that do not exist in torch.stft (left halo of tile 0
        #      and right padding): global frame index = t*L - (chunks-1) + c ----
        t = pl.program_id(1)
        gf = lax.broadcasted_iota(jnp.int32, (1, Lf), 1) + (t * L - (chunks - 1))
        yw = yw * jnp.logical_and(gf >= 0, gf < n_frames).astype(jnp.float32)

        # ---- overlap-add: out[h, c] = sum_j yw[j*hop + h, c + (chunks-1-j)] ----
        # The halo columns supply the cross-tile contributions; no zero-concats,
        # no ref read-modify-write, single lane-dense store.
        acc = yw[(chunks - 1) * hop:, 0:L]                          # j = chunks-1
        for j in range(chunks - 2, -1, -1):
            off = chunks - 1 - j
            acc = acc + yw[j * hop:(j + 1) * hop, off:off + L]
        out_ref[0] = acc

    return kernel


def torch_stft_forward(x, n_fft, hop, win_len):
    B, T = x.shape
    assert n_fft % hop == 0 and win_len <= n_fft and T % hop == 0
    n_freq = n_fft // 2 + 1
    pad = n_fft // 2
    chunks = n_fft // hop
    n_frames = 1 + T // hop
    assert n_frames >= chunks, "signal too short for this n_fft/hop"
    n_seg = n_frames + chunks - 1            # OLA buffer length in hops
    Fp = ((n_freq + 7) // 8) * 8             # freq axis padded to sublane multiple of 8

    # ---- lane (frame-axis) tiling ----
    if n_seg <= LANE_TILE:
        L = ((n_seg + 127) // 128) * 128     # lane-dense stores even for tiny inputs
        n_tiles = 1
    else:
        L = LANE_TILE
        n_tiles = pl.cdiv(n_seg, L)
    n_seg_eff = n_tiles * L
    Lf = L + chunks - 1                      # frames computed per tile (right halo)
    Ws = L + 2 * (chunks - 1)                # signal columns per tile (both halos)

    # ---- hann periodic window, center-padded to n_fft (torch.stft semantics) ----
    n = np.arange(win_len, dtype=np.float64)
    w = 0.5 - 0.5 * np.cos(2.0 * np.pi * n / win_len)
    lpad = (n_fft - win_len) // 2
    window = np.zeros(n_fft, np.float64)
    window[lpad:lpad + win_len] = w

    # ---- DFT bases with the window folded in, real/imag stacked on sublanes ----
    k = np.arange(n_freq)[:, None]
    tt = np.arange(n_fft)[None, :]
    ang = 2.0 * np.pi * k * tt / n_fft
    wk = np.full(n_freq, 2.0)
    wk[0] = 1.0
    if n_fft % 2 == 0:
        wk[-1] = 1.0

    bfw = np.zeros((2 * Fp, n_fft), np.float64)          # spec = bfw @ frames
    bfw[:n_freq] = np.cos(ang) * window[None, :]
    bfw[Fp:Fp + n_freq] = -np.sin(ang) * window[None, :]

    # interior istft window^2 OLA envelope is hop-periodic -> fold its reciprocal
    # into the synthesis basis rows (no envelope input / divide in the kernel).
    env_int = (window ** 2).reshape(chunks, hop).sum(axis=0)          # (hop,)
    env_int_g = np.where(env_int > 1e-11, env_int, 1.0)
    inv_rows = 1.0 / env_int_g[np.arange(n_fft) % hop]

    biw = np.zeros((n_fft, 2 * Fp), np.float64)          # yw = biw @ spec2
    biw[:, :n_freq] = (np.cos(ang).T * (wk[None, :] / n_fft)) * window[:, None]
    biw[:, Fp:Fp + n_freq] = -(np.sin(ang).T * (wk[None, :] / n_fft)) * window[:, None]
    biw *= inv_rows[:, None]

    # ---- glue: reflect pad (torch.stft center=True), hop-fold with halos ----
    xp = jnp.pad(x, ((0, 0), (pad, pad)), mode='reflect')            # (B, n_seg*hop)
    lz = (chunks - 1) * hop
    rz = (n_seg_eff - n_seg + chunks - 1) * hop
    xp_full = jnp.pad(xp, ((0, 0), (lz, rz)))
    idx = ((np.arange(n_tiles)[:, None, None] * L
            + np.arange(Ws)[None, None, :]) * hop
           + np.arange(hop)[None, :, None]).astype(np.int32)          # (n_tiles, hop, Ws)
    sig_tiles = xp_full[:, idx].astype(jnp.float32)                   # (B, n_tiles, hop, Ws)
    # TODO(synk): for many short utterances (small T, large B) fold the batch onto
    # the lane axis instead of one grid row per batch element.
    # TODO(synk): bf16 frames/bases would halve HBM traffic; kept f32 to preserve
    # the 1e-3 reconstruction tolerance.

    kernel = _make_kernel(n_fft, hop, Fp, chunks, L, Lf, n_frames)
    out = pl.pallas_call(
        kernel,
        out_shape=jax.ShapeDtypeStruct((B, hop, n_seg_eff), jnp.float32),
        grid_spec=pltpu.PrefetchScalarGridSpec(
            num_scalar_prefetch=0,
            grid=(B, n_tiles),
            in_specs=[
                pl.BlockSpec((1, 1, hop, Ws), lambda b, t: (b, t, 0, 0)),
                pl.BlockSpec((2 * Fp, n_fft), lambda b, t: (0, 0)),
                pl.BlockSpec((n_fft, 2 * Fp), lambda b, t: (0, 0)),
            ],
            out_specs=pl.BlockSpec((1, hop, L), lambda b, t: (b, 0, t)),
            scratch_shapes=[pltpu.VMEM((n_fft, Lf), jnp.float32)],
        ),
        compiler_params=pltpu.CompilerParams(
            dimension_semantics=("parallel", "parallel")),
    )(sig_tiles,
      jnp.asarray(bfw, jnp.float32),
      jnp.asarray(biw, jnp.float32))

    # ---- glue: de-interleave to time order, trim the `center` padding ----
    # TODO(synk): fold this hop-interleave into the downstream consumer (or store
    # time-ordered tiles) to avoid one extra read+write of the output in HBM.
    flat = jnp.transpose(out, (0, 2, 1)).reshape(B, n_seg_eff * hop)
    y = flat[:, pad:pad + T]

    # ---- exact envelope fix-up on the partially overlapped edge samples ----
    n_edge = pad - hop
    if n_edge > 0:
        env_full = np.zeros(n_seg * hop, np.float64)
        for f in range(n_frames):
            env_full[f * hop:f * hop + n_fft] += window ** 2
        env_full_g = np.where(env_full > 1e-11, env_full, 1.0)
        tl = np.arange(pad, pad + n_edge)
        tr = np.arange(n_frames * hop, pad + T)
        corr_l = jnp.asarray(env_int_g[tl % hop] / env_full_g[tl], jnp.float32)
        corr_r = jnp.asarray(env_int_g[tr % hop] / env_full_g[tr], jnp.float32)
        y = y.at[:, :n_edge].multiply(corr_l)
        y = y.at[:, T - n_edge:].multiply(corr_r)
    return y


if __name__ == "__main__":
    config = {"n_fft": 16, "hop_length": 4, "win_len": 16}
    B, T = 2, 64
    key = jax.random.PRNGKey(0)
    x = jax.random.normal(key, (B, T), dtype=jnp.float32)

    recon = torch_stft_forward(x, config["n_fft"], config["hop_length"],
                               config["win_len"])
    recon = jax.block_until_ready(recon)

    # istft(mag*exp(i*phase)) of stft(x) is (numerically) perfect reconstruction,
    # same as the PyTorch module's forward.
    assert recon.shape == (B, T), recon.shape
    err = float(np.max(np.abs(np.asarray(recon) - np.asarray(x))))
    assert err < 1e-3, err
    print("KERNEL_OK")
</pallas_src>

<mosaic_0001>
module attributes {stable_mosaic.version = 11 : i64} {
  func.func @kernel(%arg0: i32, %arg1: i32, %arg2: memref<1x1x4x134xf32, #tpu.memory_space<vmem>>, %arg3: memref<32x16xf32, #tpu.memory_space<vmem>>, %arg4: memref<16x32xf32, #tpu.memory_space<vmem>>, %arg5: memref<1x4x128xf32, #tpu.memory_space<vmem>>, %arg6: memref<16x131xf32, #tpu.memory_space<vmem>>) attributes {dimension_semantics = [#tpu.dimension_semantics<parallel>, #tpu.dimension_semantics<parallel>], iteration_bounds = array<i64: 2, 1>, scalar_prefetch = 0 : i64, scratch_operands = 1 : i64, tpu.core_type = #tpu.core_type<tc>, window_params = [{transform_indices = @transform_0, window_bounds = array<i64: 1, 1, 4, 134>}, {pipeline_mode = #tpu.pipeline_mode<synchronous>, transform_indices = @transform_1, window_bounds = array<i64: 32, 16>}, {pipeline_mode = #tpu.pipeline_mode<synchronous>, transform_indices = @transform_2, window_bounds = array<i64: 16, 32>}, {transform_indices = @transform_3, window_bounds = array<i64: 1, 4, 128>}]} {
    %c0 = arith.constant 0 : index
    %c0_0 = arith.constant 0 : index
    %c0_1 = arith.constant 0 : index
    %c0_2 = arith.constant 0 : index
    %0 = vector.load %arg2[%c0, %c0_0, %c0_1, %c0_2] : memref<1x1x4x134xf32, #tpu.memory_space<vmem>>, vector<1x1x4x134xf32>
    %1 = vector.shape_cast %0 : vector<1x1x4x134xf32> to vector<4x134xf32>
    %2 = vector.extract_strided_slice %1 {offsets = [0, 0], sizes = [4, 131], strides = [1, 1]} : vector<4x134xf32> to vector<4x131xf32>
    %c0_3 = arith.constant 0 : index
    %c0_4 = arith.constant 0 : index
    %3 = vector.load %arg6[%c0_3, %c0_4] : memref<16x131xf32, #tpu.memory_space<vmem>>, vector<4x131xf32>
    tpu.vector_store %arg6[%c0_3, %c0_4], %2 {strides = array<i32>} : memref<16x131xf32, #tpu.memory_space<vmem>>, vector<4x131xf32>,
    %4 = vector.extract_strided_slice %1 {offsets = [0, 1], sizes = [4, 131], strides = [1, 1]} : vector<4x134xf32> to vector<4x131xf32>
    %c4 = arith.constant 4 : index
    %c0_5 = arith.constant 0 : index
    %5 = vector.load %arg6[%c4, %c0_5] : memref<16x131xf32, #tpu.memory_space<vmem>>, vector<4x131xf32>
    tpu.vector_store %arg6[%c4, %c0_5], %4 {strides = array<i32>} : memref<16x131xf32, #tpu.memory_space<vmem>>, vector<4x131xf32>,
    %6 = vector.extract_strided_slice %1 {offsets = [0, 2], sizes = [4, 131], strides = [1, 1]} : vector<4x134xf32> to vector<4x131xf32>
    %c8 = arith.constant 8 : index
    %c0_6 = arith.constant 0 : index
    %7 = vector.load %arg6[%c8, %c0_6] : memref<16x131xf32, #tpu.memory_space<vmem>>, vector<4x131xf32>
    tpu.vector_store %arg6[%c8, %c0_6], %6 {strides = array<i32>} : memref<16x131xf32, #tpu.memory_space<vmem>>, vector<4x131xf32>,
    %8 = vector.extract_strided_slice %1 {offsets = [0, 3], sizes = [4, 131], strides = [1, 1]} : vector<4x134xf32> to vector<4x131xf32>
    %c12 = arith.constant 12 : index
    %c0_7 = arith.constant 0 : index
    %9 = vector.load %arg6[%c12, %c0_7] : memref<16x131xf32, #tpu.memory_space<vmem>>, vector<4x131xf32>
    tpu.vector_store %arg6[%c12, %c0_7], %8 {strides = array<i32>} : memref<16x131xf32, #tpu.memory_space<vmem>>, vector<4x131xf32>,
    %c0_8 = arith.constant 0 : index
    %c0_9 = arith.constant 0 : index
    %10 = vector.load %arg6[%c0_8, %c0_9] : memref<16x131xf32, #tpu.memory_space<vmem>>, vector<16x131xf32>
    %c0_10 = arith.constant 0 : index
    %c0_11 = arith.constant 0 : index
    %11 = vector.load %arg3[%c0_10, %c0_11] : memref<32x16xf32, #tpu.memory_space<vmem>>, vector<32x16xf32>
    %cst = arith.constant dense<0.000000e+00> : vector<32x131xf32>
    %12 = tpu.matmul %11, %10, %cst {dimension_numbers = #tpu.dot_dimension_numbers<[1], [0], [0], [1], [0, 0, 1, 1], [], []>} : vector<32x16xf32>, vector<16x131xf32>, vector<32x131xf32> -> vector<32x131xf32>
    %13 = vector.extract_strided_slice %12 {offsets = [0, 0], sizes = [16, 131], strides = [1, 1]} : vector<32x131xf32> to vector<16x131xf32>
    %14 = vector.extract_strided_slice %12 {offsets = [16, 0], sizes = [16, 131], strides = [1, 1]} : vector<32x131xf32> to vector<16x131xf32>
    %15 = arith.mulf %13, %13 : vector<16x131xf32>
    %16 = arith.mulf %14, %14 : vector<16x131xf32>
    %17 = arith.addf %15, %16 : vector<16x131xf32>
    %cst_12 = arith.constant 0.000000e+00 : f32
    %18 = vector.broadcast %cst_12 : f32 to vector<16x131xf32>
    %19 = arith.cmpf ogt, %17, %18 : vector<16x131xf32>
    %20 = arith.extui %19 : vector<16x131xi1> to vector<16x131xi32>
    %21 = arith.sitofp %20 : vector<16x131xi32> to vector<16x131xf32>
    %22 = tpu.concatenate %21, %21 in 0 : vector<16x131xf32>, vector<16x131xf32> -> vector<32x131xf32>
    %23 = arith.mulf %12, %22 : vector<32x131xf32>
    %c0_13 = arith.constant 0 : index
    %c0_14 = arith.constant 0 : index
    %24 = vector.load %arg4[%c0_13, %c0_14] : memref<16x32xf32, #tpu.memory_space<vmem>>, vector<16x32xf32>
    %cst_15 = arith.constant dense<0.000000e+00> : vector<16x131xf32>
    %25 = tpu.matmul %24, %23, %cst_15 {dimension_numbers = #tpu.dot_dimension_numbers<[1], [0], [0], [1], [0, 0, 1, 1], [], []>} : vector<16x32xf32>, vector<32x131xf32>, vector<16x131xf32> -> vector<16x131xf32>
    %26 = tpu.iota {dimensions = array<i32: 1>} : vector<1x131xi32>
    %c128_i32 = arith.constant 128 : i32
    %27 = arith.muli %arg1, %c128_i32 : i32
    %c3_i32 = arith.constant 3 : i32
    %28 = arith.subi %27, %c3_i32 : i32
    %29 = vector.broadcast %28 : i32 to vector<1x131xi32>
    %30 = arith.addi %26, %29 : vector<1x131xi32>
    %c0_i32 = arith.constant 0 : i32
    %31 = vector.broadcast %c0_i32 : i32 to vector<1x131xi32>
    %32 = arith.cmpi sge, %30, %31 : vector<1x131xi32>
    %c17_i32 = arith.constant 17 : i32
    %33 = vector.broadcast %c17_i32 : i32 to vector<1x131xi32>
    %34 = arith.cmpi slt, %30, %33 : vector<1x131xi32>
    %35 = arith.andi %32, %34 : vector<1x131xi1>
    %36 = arith.extui %35 : vector<1x131xi1> to vector<1x131xi32>
    %37 = arith.sitofp %36 : vector<1x131xi32> to vector<1x131xf32>
    %38 = vector.broadcast %37 : vector<1x131xf32> to vector<16x131xf32>
    %39 = arith.mulf %25, %38 : vector<16x131xf32>
    %40 = vector.extract_strided_slice %39 {offsets = [12, 0], sizes = [4, 128], strides = [1, 1]} : vector<16x131xf32> to vector<4x128xf32>
    %41 = vector.extract_strided_slice %39 {offsets = [8, 1], sizes = [4, 128], strides = [1, 1]} : vector<16x131xf32> to vector<4x128xf32>
    %42 = arith.addf %40, %41 : vector<4x128xf32>
    %43 = vector.extract_strided_slice %39 {offsets = [4, 2], sizes = [4, 128], strides = [1, 1]} : vector<16x131xf32> to vector<4x128xf32>
    %44 = arith.addf %42, %43 : vector<4x128xf32>
    %45 = vector.extract_strided_slice %39 {offsets = [0, 3], sizes = [4, 128], strides = [1, 1]} : vector<16x131xf32> to vector<4x128xf32>
    %46 = arith.addf %44, %45 : vector<4x128xf32>
    %c0_16 = arith.constant 0 : index
    %c0_17 = arith.constant 0 : index
    %c0_18 = arith.constant 0 : index
    %47 = vector.load %arg5[%c0_16, %c0_17, %c0_18] : memref<1x4x128xf32, #tpu.memory_space<vmem>>, vector<1x4x128xf32>
    %48 = vector.shape_cast %47 : vector<1x4x128xf32> to vector<4x128xf32>
    %49 = vector.shape_cast %46 : vector<4x128xf32> to vector<1x4x128xf32>
    tpu.vector_store %arg5[%c0_16, %c0_17, %c0_18], %49 {strides = array<i32>} : memref<1x4x128xf32, #tpu.memory_space<vmem>>, vector<1x4x128xf32>,
    return
  }
  func.func @transform_0(%arg0: i32, %arg1: i32) -> (i32, i32, i32, i32) {
    %c0_i32 = arith.constant 0 : i32
    %c0_i32_0 = arith.constant 0 : i32
    %c0_i32_1 = arith.constant 0 : i32
    return %arg0, %arg1, %c0_i32, %c0_i32_0 : i32, i32, i32, i32
  }
  func.func @transform_1(%arg0: i32, %arg1: i32) -> (i32, i32) {
    %c0_i32 = arith.constant 0 : i32
    %c0_i32_0 = arith.constant 0 : i32
    %c0_i32_1 = arith.constant 0 : i32
    return %c0_i32, %c0_i32_0 : i32, i32
  }
  func.func @transform_2(%arg0: i32, %arg1: i32) -> (i32, i32) {
    %c0_i32 = arith.constant 0 : i32
    %c0_i32_0 = arith.constant 0 : i32
    %c0_i32_1 = arith.constant 0 : i32
    return %c0_i32, %c0_i32_0 : i32, i32
  }
  func.func @transform_3(%arg0: i32, %arg1: i32) -> (i32, i32, i32) {
    %c0_i32 = arith.constant 0 : i32
    %c0_i32_0 = arith.constant 0 : i32
    return %arg0, %c0_i32, %arg1 : i32, i32, i32
  }
}

</mosaic_0001>

<llo_original>
// kernel: tpu_custom_call.1
$region0: #{tpu_custom_call.1}
  #allocation0 [shape = 'u32[]', space=smem, size = 0x4, offset = 0x4, fixed_abs, tag = 'smem constant byte address 0x4 - core index']
  #allocation1 [shape = 'u32[144,128]{1,0:T(1,128)}', space=vmem, size = 0x12000, scoped, tag = 'internal scratch']
  #allocation2 [shape = 'f32[16,131]{1,0:T(8,128)}', space=vmem, size = 0x4000, scoped, tag = 'scratch operand']
  %s0 = inlined_call_operand.vmem [shape: f32[2,1,4,134], index: 0, kind: input, shape index: {}]
  %s1 = inlined_call_operand.vmem [shape: f32[32,16], index: 1, kind: input, shape index: {}]
  %s2 = inlined_call_operand.vmem [shape: f32[16,32], index: 2, kind: input, shape index: {}]
  %s3 = inlined_call_operand.hbm [shape: f32[2,4,128], index: 3, kind: output, shape index: {}]
  %s4 = sld [smem:[#allocation0]]
  $region45: #{tpu_custom_call.1} parent=0
    _
  %s6 = ssub.s32 1, %s4
  %s7 = scalar_select 0, %s6, %s4
  $region1: #{tpu_custom_call.1} parent=0
    #allocation3 [shape = 'u8[4096]{0}', space=vmem, size = 0x1000, scoped, tag = 'output window, operand 0']
    #allocation4 [shape = 's32[2]{0}', space=sflag, size = 0x8, scoped, tag = 'scoped memory for tpu_custom_call.1']
    %8 = vsyncpa [#allocation4], 0
    %s9 = scalar_lea.sflag [#allocation4], 1
    %10 = vsyncpa %s9, 0
    loop: start=0, step=1, limit=4
    $region2: #{tpu_custom_call.1} parent=1 // loop_pre_header
      _
    $region3: #{tpu_custom_call.1} parent=1 // loop_header
      %s12 = sphi 0, %s16
      %p13 = scmp.ge.s32.totalorder %s12, 4
      %s19 = sphi 0, %s31
      %s20 = sphi 0, %s27
      %s21 = sphi 0, %s19
      %s22 = sphi 0, %s20
      %s23 = sphi 0, %s21
      %s24 = sphi 0, %s22
      %s36 = sphi 0, %s38
      %s39 = sphi 0, %s36
      %s40 = sphi 0, %s39
      %s56 = sphi 0, %s40
      %s60 = sphi 0, %s60
      %s62 = sphi 0, %s60
      %s63 = sphi 0, %s62
      %s77 = sphi 0, %s63
      %s81 = sphi 0, %s81
      %s83 = sphi 0, %s81
      %s84 = sphi 0, %s83
      %s98 = sphi 0, %s84
      %s106 = sphi 0, %s108
      %s109 = sphi 0, %s106
      %s110 = sphi 0, %s109
      %s126 = sphi 0, %s110
    $region4: #{tpu_custom_call.1} parent=1 // loop_header_branch
      %15 = sbr.rel (%p13) target = $region8
    $region5: #{tpu_custom_call.1} parent=1 // loop_body
      %s17 = ssub.s32 %s12, 1
      %s18 = ssub.s32 %s12, 2
      %s25 = sadd.s32 1, %s20
      %p26 = scmp.ge.s32.totalorder %s25, 1
      %s27 = scalar_select %p26, 0, %s25
      %s28 = sadd.s32 1, %s19
      %s29 = scalar_select %p26, %s28, %s19
      %p30 = scmp.ge.s32.totalorder %s29, 2
      %s31 = scalar_select %p30, 0, %s29
      %s32 = ssub.s32 %s19, %s31
      %s33 = ssub.s32 %s20, %s27
      %s34 = sor.u32 %s32, %s33
      %p35 = scmp.eq.s32.totalorder %s34, 0
      %s37 = sadd.s32 %s36, 1
      %s38 = scalar_select %p35, %s36, %s37
      %p41 = pneg %p35
      %p42 = scmp.eq.s32.totalorder %s12, 1
      %p43 = por %p41, %p42
      %p44 = scmp.ne.s32.totalorder %s36, %s39
      %p45 = scmp.eq.s32.totalorder %s12, 0
      %p46 = por %p44, %p45
      %p47 = scmp.ne.s32.totalorder %s36, %s39
      %p48 = scmp.eq.s32.totalorder %s17, 1
      %p49 = por %p47, %p48
      %p50 = scmp.ne.s32.totalorder %s39, %s40
      %p51 = scmp.eq.s32.totalorder %s17, 0
      %p52 = por %p50, %p51
      %p53 = scmp.ne.s32.totalorder %s39, %s40
      %p54 = scmp.eq.s32.totalorder %s18, 1
      %p55 = por %p53, %p54
      %p57 = scmp.ne.s32.totalorder %s40, %s56
      %p58 = scmp.eq.s32.totalorder %s18, 0
      %p59 = por %p57, %p58
      %s61 = sadd.s32 %s60, 1
      %p64 = scmp.eq.s32.totalorder %s12, 1
      %p65 = scmp.ne.s32.totalorder %s60, %s62
      %p66 = scmp.eq.s32.totalorder %s12, 0
      %p67 = por %p65, %p66
      %p68 = scmp.ne.s32.totalorder %s60, %s62
      %p69 = scmp.eq.s32.totalorder %s17, 1
      %p70 = por %p68, %p69
      %p71 = scmp.ne.s32.totalorder %s62, %s63
      %p72 = scmp.eq.s32.totalorder %s17, 0
      %p73 = por %p71, %p72
      %p74 = scmp.ne.s32.totalorder %s62, %s63
      %p75 = scmp.eq.s32.totalorder %s18, 1
      %p76 = por %p74, %p75
      %p78 = scmp.ne.s32.totalorder %s63, %s77
      %p79 = scmp.eq.s32.totalorder %s18, 0
      %p80 = por %p78, %p79
      %s82 = sadd.s32 %s81, 1
      %p85 = scmp.eq.s32.totalorder %s12, 1
      %p86 = scmp.ne.s32.totalorder %s81, %s83
      %p87 = scmp.eq.s32.totalorder %s12, 0
      %p88 = por %p86, %p87
      %p89 = scmp.ne.s32.totalorder %s81, %s83
      %p90 = scmp.eq.s32.totalorder %s17, 1
      %p91 = por %p89, %p90
      %p92 = scmp.ne.s32.totalorder %s83, %s84
      %p93 = scmp.eq.s32.totalorder %s17, 0
      %p94 = por %p92, %p93
      %p95 = scmp.ne.s32.totalorder %s83, %s84
      %p96 = scmp.eq.s32.totalorder %s18, 1
      %p97 = por %p95, %p96
      %p99 = scmp.ne.s32.totalorder %s84, %s98
      %p100 = scmp.eq.s32.totalorder %s18, 0
      %p101 = por %p99, %p100
      %s102 = ssub.s32 %s19, %s31
      %s103 = ssub.s32 %s20, %s27
      %s104 = sor.u32 %s102, %s103
      %p105 = scmp.eq.s32.totalorder %s104, 0
      %s107 = sadd.s32 %s106, 1
      %s108 = scalar_select %p105, %s106, %s107
      %p111 = pneg %p105
      %p112 = scmp.eq.s32.totalorder %s12, 1
      %p113 = por %p111, %p112
      %p114 = scmp.ne.s32.totalorder %s106, %s109
      %p115 = scmp.eq.s32.totalorder %s12, 0
      %p116 = por %p114, %p115
      %p117 = scmp.ne.s32.totalorder %s106, %s109
      %p118 = scmp.eq.s32.totalorder %s17, 1
      %p119 = por %p117, %p118
      %p120 = scmp.ne.s32.totalorder %s109, %s110
      %p121 = scmp.eq.s32.totalorder %s17, 0
      %p122 = por %p120, %p121
      %p123 = scmp.ne.s32.totalorder %s109, %s110
      %p124 = scmp.eq.s32.totalorder %s18, 1
      %p125 = por %p123, %p124
      %p127 = scmp.ne.s32.totalorder %s110, %s126
      %p128 = scmp.eq.s32.totalorder %s18, 0
      %p129 = por %p127, %p128
      %p130 = scmp.le.s32.totalorder 1, %s12
      %p131 = scmp.lt.s32.totalorder %s12, 3
      %p132 = pnand %p130, %p131
      %p133 = pneg %p132
      // Predicated region
      $region9: #{tpu_custom_call.1} parent=5 // pred_check
        _
      $region10: #{tpu_custom_call.1} parent=5 // pred_check_branch
        %135 = sbr.rel (%p132) target = $region12
      $region11: #{tpu_custom_call.1} parent=5 // pred_region
        %s136 = ssub.s32 %s12, 1
        // Predicated region
        $region13: #{tpu_custom_call.1} parent=11 // pred_check
          %p137 = pneg %p73
        $region14: #{tpu_custom_call.1} parent=11 // pred_check_branch
          %139 = sbr.rel (%p137) target = $region16
        $region15: #{tpu_custom_call.1} parent=11 // pred_region
          _
        $region16: #{tpu_custom_call.1} parent=11 // pred_fallthru
          _
        // Predicated region
        $region17: #{tpu_custom_call.1} parent=11 // pred_check
          %p140 = pneg %p94
        $region18: #{tpu_custom_call.1} parent=11 // pred_check_branch
          %142 = sbr.rel (%p140) target = $region20
        $region19: #{tpu_custom_call.1} parent=11 // pred_region
          _
        $region20: #{tpu_custom_call.1} parent=11 // pred_fallthru
          _
      $region12: #{tpu_custom_call.1} parent=5 // pred_fallthru
        _
      %p143 = scmp.lt.s32.totalorder %s12, 2
      // Predicated region
      $region21: #{tpu_custom_call.1} parent=5 // pred_check
        %p144 = pneg %p143
      $region22: #{tpu_custom_call.1} parent=5 // pred_check_branch
        %146 = sbr.rel (%p144) target = $region24
      $region23: #{tpu_custom_call.1} parent=5 // pred_region
        // Predicated region
        $region25: #{tpu_custom_call.1} parent=23 // pred_check
          %p147 = pneg %p46
        $region26: #{tpu_custom_call.1} parent=23 // pred_check_branch
          %149 = sbr.rel (%p147) target = $region28
        $region27: #{tpu_custom_call.1} parent=23 // pred_region
          %p150 = scmp.lt.s32.totalorder %s19, 1
          %s151 = scalar_select %p150, %s19, 1
          %p152 = scmp.lt.s32.totalorder %s20, 0
          %s153 = scalar_select %p152, %s20, 0
          %s154 = smul.addr %s153, 2
          %s155 = smul.addr %s151, 2
          %s156 = sadd.s32 %s154, %s155
          %s157 = smul.addr %s156, 4
          %s158 = scalar_lea.vmem %s0, %s157
        $region28: #{tpu_custom_call.1} parent=23 // pred_fallthru
          _
      $region24: #{tpu_custom_call.1} parent=5 // pred_fallthru
        _
      %p159 = scmp.le.s32.totalorder 1, %s12
      %p160 = scmp.lt.s32.totalorder %s12, 3
      %p161 = pnand %p159, %p160
      %p162 = pneg %p161
      // Predicated region
      $region29: #{tpu_custom_call.1} parent=5 // pred_check
        _
      $region30: #{tpu_custom_call.1} parent=5 // pred_check_branch
        %164 = sbr.rel (%p161) target = $region32
      $region31: #{tpu_custom_call.1} parent=5 // pred_region
        %s165 = ssub.s32 %s12, 1
        %p166 = scmp.lt.s32.totalorder %s21, 1
        %s167 = scalar_select %p166, %s21, 1
        %p168 = scmp.lt.s32.totalorder %s22, 0
        %s169 = scalar_select %p168, %s22, 0
        %s170 = smul.addr %s169, 2
        %s171 = smul.addr %s167, 2
        %s172 = sadd.s32 %s170, %s171
        %s173 = smul.addr %s172, 4
        %s174 = scalar_lea.vmem %s0, %s173
        %p175 = pneg %p52
        %p176 = pneg %p49
        %p177 = pneg %p73
        %p178 = pneg %p70
        %p179 = pneg %p94
        %p180 = pneg %p91
        %p181 = pneg %p122
        %p182 = pneg %p119
        %s183 = sand.u32 %s109, 1
        %s184 = scalar_lea.sflag [#allocation4], %s183
        %s185 = sand.u32 %s109, 1
        %s186 = smul.addr %s185, 4
        %s187 = scalar_lea.vmem [#allocation3], %s186
        %p188 = scmp.lt.s32.totalorder %s21, 1
        %s189 = scalar_select %p188, %s21, 1
        %p190 = scmp.lt.s32.totalorder %s22, 0
        %s191 = scalar_select %p190, %s22, 0
        %s192 = smul.addr %s191, 2
        %s193 = smul.addr %s189, 2
        %s194 = sadd.s32 %s192, %s193
        %s195 = smul.addr %s194, 4
        %s196 = scalar_lea.vmem %s0, %s195
        %v197 = vld [vmem:[%s196] sm:$0xff]
        %v199 = vcombine.high %v197, %v197
        %201 = vst [vmem:[#allocation2] sm:$0xf] %v197
        %vm202 = vcmask 19456
        %203 = vst.msk [vmem:[#allocation2 + $0x8] sm:$0xf] %vm202, %v199
        %v204 = vcombine.low %v197, %v197
        %205 = vrot.lane.b32.xlu0 %v204, 127
        %v206 = vpop.permute.xlu0 %205
        %207 = vrot.lane.b32.xlu0 %v197, 127
        %v208 = vpop.permute.xlu0 %207
        %vm209 = vcmask 1039360
        %v210 = vsel %vm209, %v206, %v208
        %213 = vst [vmem:[#allocation2] sm:$0xf0] %v210
        %vm214 = vcmask 23556
        %215 = vst.msk [vmem:[#allocation2 + $0x8] sm:$0xf0] %vm214, %v208
        %216 = vrot.lane.b32.xlu0 %v197, 126
        %v217 = vpop.permute.xlu0 %216
        %218 = vrot.lane.b32.xlu0 %v199, 126
        %v219 = vpop.permute.xlu0 %218
        %vm220 = vcmask 1031168
        %v221 = vsel %vm220, %v217, %v219
        %224 = vst [vmem:[#allocation2 + $0x10] sm:$0xf] %v221
        %225 = vst.msk [vmem:[#allocation2 + $0x18] sm:$0xf] %vm202, %v219
        %226 = vrot.lane.b32.xlu0 %v204, 125
        %v227 = vpop.permute.xlu0 %226
        %228 = vrot.lane.b32.xlu0 %v197, 125
        %v229 = vpop.permute.xlu0 %228
        %vm230 = vcmask 1022976
        %v231 = vsel %vm230, %v227, %v229
        %234 = vst [vmem:[#allocation2 + $0x10] sm:$0xf0] %v231
        %235 = vst.msk [vmem:[#allocation2 + $0x18] sm:$0xf0] %vm214, %v229
        %v236 = vld [vmem:[#allocation2] sm:$0xff]
        %v237 = vld [vmem:[#allocation2 + $0x8] sm:$0xff]
        %v238 = vld [vmem:[#allocation2 + $0x10] sm:$0xff]
        %v239 = vld [vmem:[#allocation2 + $0x18] sm:$0xff]
        %v240 = vld [vmem:[%s1] sm:$0xff]
        %v241 = vld [vmem:[%s1 + $0x8] sm:$0xff]
        %v242 = vld [vmem:[%s1 + $0x10] sm:$0xff]
        %v243 = vld [vmem:[%s1 + $0x18] sm:$0xff]
        %vm244 = vcmask 130048
        %v246 = vsel %vm244, %v240, 0
        %v249 = vsel %vm244, %v241, 0
        %v252 = vsel %vm244, %v242, 0
        %v255 = vsel %vm244, %v243, 0
        %257 = vmatprep.subr.mxu0 %v237
        %258 = vmatpush1.msra.mxu0 %v236
        %259 = vmatprep.subr.mxu0 %v239
        %260 = vmatpush1.msra.mxu0 %v238
        %261 = vmatprep.subr.mxu0 0.0
        %262 = vmatpush1.msra.mxu0 0.0
        %263 = vmatprep.subr.mxu0 0.0
        %264 = vmatpush1.msra.mxu0 0.0
        %265 = vmatprep.subr.mxu0 0.0
        %266 = vmatpush1.msra.mxu0 0.0
        %267 = vmatprep.subr.mxu0 0.0
        %268 = vmatpush1.msra.mxu0 0.0
        %269 = vmatprep.subr.mxu0 0.0
        %270 = vmatpush1.msra.mxu0 0.0
        %271 = vmatprep.subr.mxu0 0.0
        %272 = vmatpush1.msra.mxu0 0.0
        %273 = vmatprep.subr.mxu0 0.0
        %274 = vmatpush1.msra.mxu0 0.0
        %275 = vmatprep.subr.mxu0 0.0
        %276 = vmatpush1.msra.mxu0 0.0
        %277 = vmatprep.subr.mxu0 0.0
        %278 = vmatpush1.msra.mxu0 0.0
        %279 = vmatprep.subr.mxu0 0.0
        %280 = vmatpush1.msra.mxu0 0.0
        %281 = vmatprep.subr.mxu0 0.0
        %282 = vmatpush1.msra.mxu0 0.0
        %283 = vmatprep.subr.mxu0 0.0
        %284 = vmatpush1.msra.mxu0 0.0
        %285 = vmatprep.subr.mxu0 0.0
        %286 = vmatpush1.msra.mxu0 0.0
        %287 = vmatprep.subr.mxu0 0.0
        %288 = vmatpush1.msra.mxu0 0.0
        %289 = vmatprep.subr.mxu0 0.0
        %290 = vmatpush1.msra.mxu0 0.0
        %291 = vmatprep.subr.mxu0 0.0
        %292 = vmatpush1.msra.mxu0 0.0
        %293 = vmatprep.subr.mxu0 0.0
        %294 = vmatpush1.msra.mxu0 0.0
        %295 = vmatprep.subr.mxu0 0.0
        %296 = vmatpush1.msra.mxu0 0.0
        %297 = vmatprep.subr.mxu0 0.0
        %298 = vmatpush1.msra.mxu0 0.0
        %299 = vmatprep.subr.mxu0 0.0
        %300 = vmatpush1.msra.mxu0 0.0
        %301 = vmatprep.subr.mxu0 0.0
        %302 = vmatpush1.msra.mxu0 0.0
        %303 = vmatprep.subr.mxu0 0.0
        %304 = vmatpush1.msra.mxu0 0.0
        %305 = vmatprep.subr.mxu0 0.0
        %306 = vmatpush1.msra.mxu0 0.0
        %307 = vmatprep.subr.mxu0 0.0
        %308 = vmatpush1.msra.mxu0 0.0
        %309 = vmatprep.subr.mxu0 0.0
        %310 = vmatpush1.msra.mxu0 0.0
        %311 = vmatprep.subr.mxu0 0.0
        %312 = vmatpush1.msra.mxu0 0.0
        %313 = vmatprep.subr.mxu0 0.0
        %314 = vmatpush1.msra.mxu0 0.0
        %315 = vmatprep.subr.mxu0 0.0
        %316 = vmatpush1.msra.mxu0 0.0
        %317 = vmatprep.subr.mxu0 0.0
        %318 = vmatpush1.msra.mxu0 0.0
        %319 = vmatprep.subr.mxu0 0.0
        %320 = vmatpush1.msra.mxu0 0.0
        %321 = vmatprep.mubr.f32.mxu0 0.0
        %322 = vmatmul.mubr.f32.gmra.mrb[0].mxu0 %v246
        %v323 = vpop.f32.mrb[0].mxu0
        %v324 = vadd.f32 0.0, %v323
        %v325 = vpop.f32.mrb[0].mxu0
        %v326 = vadd.f32 0.0, %v325
        %327 = vmatprep.mubr.f32.mxu0 0.0
        %328 = vmatmul.mubr.f32.gmra.mrb[0].mxu0 %v249
        %v329 = vpop.f32.mrb[0].mxu0
        %v330 = vadd.f32 0.0, %v329
        %v331 = vpop.f32.mrb[0].mxu0
        %v332 = vadd.f32 0.0, %v331
        %333 = vmatprep.mubr.f32.mxu0 0.0
        %334 = vmatmul.mubr.f32.gmra.mrb[0].mxu0 %v252
        %v335 = vpop.f32.mrb[0].mxu0
        %v336 = vadd.f32 0.0, %v335
        %v337 = vpop.f32.mrb[0].mxu0
        %v338 = vadd.f32 0.0, %v337
        %339 = vmatprep.mubr.f32.mxu0 0.0
        %340 = vmatmul.mubr.f32.gmra.mrb[0].mxu0 %v255
        %v341 = vpop.f32.mrb[0].mxu0
        %v342 = vadd.f32 0.0, %v341
        %v343 = vpop.f32.mrb[0].mxu0
        %v344 = vadd.f32 0.0, %v343
        %345 = vdwg.mxu0
        %v346 = vmul.f32 %v324, %v324
        %v347 = vmul.f32 %v326, %v326
        %v348 = vmul.f32 %v330, %v330
        %v349 = vmul.f32 %v332, %v332
        %v350 = vmul.f32 %v336, %v336
        %v351 = vmul.f32 %v338, %v338
        %v352 = vmul.f32 %v342, %v342
        %v353 = vmul.f32 %v344, %v344
        %v354 = vadd.f32 %v346, %v350
        %v355 = vadd.f32 %v347, %v351
        %v356 = vadd.f32 %v348, %v352
        %v357 = vadd.f32 %v349, %v353
        %vm358 = vcmp.gt.f32.partialorder %v354, 0.0
        %vm359 = vcmp.gt.f32.partialorder %v355, 0.0
        %vm360 = vcmp.gt.f32.partialorder %v356, 0.0
        %vm361 = vcmp.gt.f32.partialorder %v357, 0.0
        %v362 = vsel %vm358, 1, 0
        %v363 = vsel %vm359, 1, 0
        %v364 = vsel %vm360, 1, 0
        %v365 = vsel %vm361, 1, 0
        %v366 = vcvt.s32.f32 %v362
        %v367 = vcvt.s32.f32 %v363
        %v368 = vcvt.s32.f32 %v364
        %v369 = vcvt.s32.f32 %v365
        %v370 = vmul.f32 %v324, %v366
        %v371 = vmul.f32 %v326, %v367
        %v372 = vmul.f32 %v330, %v368
        %v373 = vmul.f32 %v332, %v369
        %v374 = vmul.f32 %v336, %v366
        %v375 = vmul.f32 %v338, %v367
        %v376 = vmul.f32 %v342, %v368
        %v377 = vmul.f32 %v344, %v369
        %v378 = vld [vmem:[%s2] sm:$0xff]
        %v379 = vld [vmem:[%s2 + $0x8] sm:$0xff]
        %vm380 = vcmask 261120
        %v382 = vsel %vm380, %v378, 0
        %v385 = vsel %vm380, %v379, 0
        %387 = vmatprep.subr.mxu0 %v371
        %388 = vmatpush1.msra.mxu0 %v370
        %389 = vmatprep.subr.mxu0 %v373
        %390 = vmatpush1.msra.mxu0 %v372
        %391 = vmatprep.subr.mxu0 %v375
        %392 = vmatpush1.msra.mxu0 %v374
        %393 = vmatprep.subr.mxu0 %v377
        %394 = vmatpush1.msra.mxu0 %v376
        %395 = vmatprep.subr.mxu0 0.0
        %396 = vmatpush1.msra.mxu0 0.0
        %397 = vmatprep.subr.mxu0 0.0
        %398 = vmatpush1.msra.mxu0 0.0
        %399 = vmatprep.subr.mxu0 0.0
        %400 = vmatpush1.msra.mxu0 0.0
        %401 = vmatprep.subr.mxu0 0.0
        %402 = vmatpush1.msra.mxu0 0.0
        %403 = vmatprep.subr.mxu0 0.0
        %404 = vmatpush1.msra.mxu0 0.0
        %405 = vmatprep.subr.mxu0 0.0
        %406 = vmatpush1.msra.mxu0 0.0
        %407 = vmatprep.subr.mxu0 0.0
        %408 = vmatpush1.msra.mxu0 0.0
        %409 = vmatprep.subr.mxu0 0.0
        %410 = vmatpush1.msra.mxu0 0.0
        %411 = vmatprep.subr.mxu0 0.0
        %412 = vmatpush1.msra.mxu0 0.0
        %413 = vmatprep.subr.mxu0 0.0
        %414 = vmatpush1.msra.mxu0 0.0
        %415 = vmatprep.subr.mxu0 0.0
        %416 = vmatpush1.msra.mxu0 0.0
        %417 = vmatprep.subr.mxu0 0.0
        %418 = vmatpush1.msra.mxu0 0.0
        %419 = vmatprep.subr.mxu0 0.0
        %420 = vmatpush1.msra.mxu0 0.0
        %421 = vmatprep.subr.mxu0 0.0
        %422 = vmatpush1.msra.mxu0 0.0
        %423 = vmatprep.subr.mxu0 0.0
        %424 = vmatpush1.msra.mxu0 0.0
        %425 = vmatprep.subr.mxu0 0.0
        %426 = vmatpush1.msra.mxu0 0.0
        %427 = vmatprep.subr.mxu0 0.0
        %428 = vmatpush1.msra.mxu0 0.0
        %429 = vmatprep.subr.mxu0 0.0
        %430 = vmatpush1.msra.mxu0 0.0
        %431 = vmatprep.subr.mxu0 0.0
        %432 = vmatpush1.msra.mxu0 0.0
        %433 = vmatprep.subr.mxu0 0.0
        %434 = vmatpush1.msra.mxu0 0.0
        %435 = vmatprep.subr.mxu0 0.0
        %436 = vmatpush1.msra.mxu0 0.0
        %437 = vmatprep.subr.mxu0 0.0
        %438 = vmatpush1.msra.mxu0 0.0
        %439 = vmatprep.subr.mxu0 0.0
        %440 = vmatpush1.msra.mxu0 0.0
        %441 = vmatprep.subr.mxu0 0.0
        %442 = vmatpush1.msra.mxu0 0.0
        %443 = vmatprep.subr.mxu0 0.0
        %444 = vmatpush1.msra.mxu0 0.0
        %445 = vmatprep.subr.mxu0 0.0
        %446 = vmatpush1.msra.mxu0 0.0
        %447 = vmatprep.subr.mxu0 0.0
        %448 = vmatpush1.msra.mxu0 0.0
        %449 = vmatprep.subr.mxu0 0.0
        %450 = vmatpush1.msra.mxu0 0.0
        %451 = vmatprep.mubr.f32.mxu0 0.0
        %452 = vmatmul.mubr.f32.gmra.mrb[0].mxu0 %v382
        %v453 = vpop.f32.mrb[0].mxu0
        %v454 = vadd.f32 0.0, %v453
        %v455 = vpop.f32.mrb[0].mxu0
        %v456 = vadd.f32 0.0, %v455
        %457 = vmatprep.mubr.f32.mxu0 0.0
        %458 = vmatmul.mubr.f32.gmra.mrb[0].mxu0 %v385
        %v459 = vpop.f32.mrb[0].mxu0
        %v460 = vadd.f32 0.0, %v459
        %v461 = vpop.f32.mrb[0].mxu0
        %v462 = vadd.f32 0.0, %v461
        %463 = vdwg.mxu0
        %v464 = vlaneseq
        %v465 = vand.u32 %v464, 127
        %v466 = vadd.s32 %v465, 128
        %s467 = smul.u32 %s22, 128
        %s468 = ssub.s32 %s467, 3
        %v469 = vstv %s468
        %v470 = vadd.s32 %v465, %v469
        %v471 = vadd.s32 %v466, %v469
        %vm472 = vcmp.ge.s32.totalorder %v470, 0
        %vm473 = vcmp.ge.s32.totalorder %v471, 0
        %vm474 = vcmp.lt.s32.totalorder %v470, 17
        %vm475 = vcmp.lt.s32.totalorder %v471, 17
        %vm476 = vmand %vm472, %vm474
        %vm477 = vmand %vm473, %vm475
        %v478 = vsel %vm476, 1, 0
        %v479 = vsel %vm477, 1, 0
        %v480 = vcvt.s32.f32 %v478
        %v481 = vcvt.s32.f32 %v479
        %v482 = vmul.f32 %v454, %v480
        %v483 = vmul.f32 %v456, %v481
        %v484 = vmul.f32 %v460, %v480
        %v485 = vmul.f32 %v462, %v481
        %v488 = vrot.slane %v484, 4
        %v489 = vrot.slane %v485, 4
        %490 = vrot.lane.b32.xlu0 %v488, 127
        %v491 = vpop.permute.xlu0 %490
        %492 = vrot.lane.b32.xlu0 %v489, 127
        %v493 = vpop.permute.xlu0 %492
        %v494 = vsel %vm209, %v491, %v493
        %v496 = vadd.f32 %v484, %v494
        %499 = vrot.lane.b32.xlu0 %v482, 126
        %v500 = vpop.permute.xlu0 %499
        %501 = vrot.lane.b32.xlu0 %v483, 126
        %v502 = vpop.permute.xlu0 %501
        %v503 = vsel %vm220, %v500, %v502
        %v505 = vadd.f32 %v496, %v503
        %v506 = vrot.slane %v482, 4
        %v507 = vrot.slane %v483, 4
        %508 = vrot.lane.b32.xlu0 %v506, 125
        %v509 = vpop.permute.xlu0 %508
        %510 = vrot.lane.b32.xlu0 %v507, 125
        %v511 = vpop.permute.xlu0 %510
        %v512 = vsel %vm230, %v509, %v511
        %v514 = vadd.f32 %v505, %v512
        %515 = vst [vmem:[%s187 - $0x4] sm:$0xf0] %v514
        %s516 = sand.u32 %s109, 1
        %s517 = scalar_lea.sflag [#allocation4], %s516
        %s518 = sand.u32 %s109, 1
        %s519 = smul.addr %s518, 4
        %s520 = scalar_lea.vmem [#allocation3], %s519
        // Predicated region
        $region33: #{tpu_custom_call.1} parent=31 // pred_check
          %p521 = pneg %p119
        $region34: #{tpu_custom_call.1} parent=31 // pred_check_branch
          %523 = sbr.rel (%p521) target = $region36
        $region35: #{tpu_custom_call.1} parent=31 // pred_region
          %s525 = ssub.s32 64, 64
          %526 = vsyncadd %s517, %s525
          %s527 = sadd.s32 %s22, %s21
          %s528 = smul.addr %s527, 64
          %s529 = scalar_lea.hbm %s3, %s528
          %s531 = sshll.u32 %s520, 4
          %s532 = int_to_ptr.vmem [resolvable:$true] %s531
          %534 = dma.vmem_to_hbm [thread:$0]  %s532, 64, %s529, %s517
        $region36: #{tpu_custom_call.1} parent=31 // pred_fallthru
          _
      $region32: #{tpu_custom_call.1} parent=5 // pred_fallthru
        _
      %p535 = scmp.le.s32.totalorder 2, %s12
      // Predicated region
      $region37: #{tpu_custom_call.1} parent=5 // pred_check
        %p536 = pneg %p535
      $region38: #{tpu_custom_call.1} parent=5 // pred_check_branch
        %538 = sbr.rel (%p536) target = $region40
      $region39: #{tpu_custom_call.1} parent=5 // pred_region
        %s539 = ssub.s32 %s12, 2
        // Predicated region
        $region41: #{tpu_custom_call.1} parent=39 // pred_check
          %p540 = pneg %p125
        $region42: #{tpu_custom_call.1} parent=39 // pred_check_branch
          %542 = sbr.rel (%p540) target = $region44
        $region43: #{tpu_custom_call.1} parent=39 // pred_region
          %s543 = sand.u32 %s110, 1
          %s544 = scalar_lea.sflag [#allocation4], %s543
          %s545 = sand.u32 %s110, 1
          %s546 = smul.addr %s545, 4
          %s547 = scalar_lea.vmem [#allocation3], %s546
          %548 = dma.done %s544, 64
        $region44: #{tpu_custom_call.1} parent=39 // pred_fallthru
          _
      $region40: #{tpu_custom_call.1} parent=5 // pred_fallthru
        _
    $region6: #{tpu_custom_call.1} parent=1 // loop_footer
      %s16 = sadd.s32 1, %s12
    $region7: #{tpu_custom_call.1} parent=1 // loop_footer_branch
      %11 = sbr.rel target = $region3
    $region8: #{tpu_custom_call.1} parent=1 // loop_exit
      _
    %549 = vsyncpa [#allocation4], 1
    %s550 = scalar_lea.sflag [#allocation4], 1
    %551 = vsyncpa %s550, 1

</llo_original>
